<compile_context>
chip_gen: v7x
topology: tpu7x:2x2x1
jax: 0.10.0
libtpu: 0.0.40
codegen_flags: <defaults>
</compile_context>

<pallas_src>
import math

import jax
import jax.numpy as jnp
from jax.experimental import pallas as pl
from jax.experimental.pallas import tpu as pltpu


def _round_up(a, m):
    return ((a + m - 1) // m) * m


def _packed_dot_kernel(x_ref, wexp_ref, b_ref, o_ref):
    # x_ref:    (TP, R)  input dtype (cast in-kernel; saves a wrapper HBM pass)
    # wexp_ref: (R, W)   f32; row r holds w in lanes [r*D, (r+1)*D), zeros elsewhere
    # b_ref:    (1, W)   f32; bias tiled R times along lanes
    # o_ref:    (TP, W)  out dtype; W % 128 == 0 -> unmasked, lane-dense stores
    x = x_ref[...].astype(jnp.float32)
    acc = jnp.dot(x, wexp_ref[...], preferred_element_type=jnp.float32)   # MXU
    o_ref[...] = jnp.maximum(acc + b_ref[...], 0.0).astype(o_ref.dtype)   # VPU


def _broadcast_kernel(x_ref, w_ref, b_ref, o_ref):
    # dim_emb % 128 == 0: rows are already lane-dense; a pure VPU broadcast
    # mul-add is optimal (3 ops/vreg) and needs no contraction at all.
    x = x_ref[...].astype(jnp.float32)            # (TN, 1)
    o_ref[...] = jnp.maximum(x * w_ref[...] + b_ref[...], 0.0).astype(o_ref.dtype)


def float_encoding(x, weight, bias, *, out_dtype=jnp.float32,
                   target_block_bytes=2 << 20):
    """Pallas equivalent of F.relu(nn.Linear(1, dim_emb)(x.float())).

    x:      (..., 1) any float dtype (cast to f32 inside the kernel)
    weight: (dim_emb, 1)
    bias:   (dim_emb,)
    returns (..., dim_emb) in `out_dtype` (float32 by default, matching torch)
    """
    assert x.shape[-1] == 1, "FloatEncoding expects a trailing singleton dim"
    dim_emb = weight.shape[0]
    lead_shape = x.shape[:-1]
    n = 1
    for s in lead_shape:
        n *= int(s)
    n = max(n, 1)

    w32 = weight.astype(jnp.float32).reshape(1, dim_emb)   # tiny params, cast once
    b32 = bias.astype(jnp.float32).reshape(1, dim_emb)
    out_itemsize = jnp.dtype(out_dtype).itemsize

    if dim_emb % 128 == 0:
        # ---- already lane-dense: rank-1 broadcast on the VPU ----
        r = 1
        w_lanes = dim_emb
        n_rows = n
        x_in = x.reshape(n, 1)                       # metadata-only reshape
        w_arg, b_arg = w32, b32
        kernel = _broadcast_kernel
    else:
        # ---- lane-dense packed path (all other dims): MXU contraction ----
        r = 128 // math.gcd(dim_emb, 128)            # power of two, >= 2
        if r < 8:
            r *= 8 // r                              # force K >= 8, multiple of 8
        w_lanes = r * dim_emb                        # multiple of 128
        n_rows = pl.cdiv(n, r)
        x_flat = x.reshape(n)                        # keep original dtype
        pad = n_rows * r - n
        if pad:
            # Fires only when n % r != 0.  TODO(synk): the pad (and matching
            # output slice) still copy; a ragged-tail kernel could remove it.
            x_flat = jnp.pad(x_flat, (0, pad))
        x_in = x_flat.reshape(n_rows, r)             # contiguous (rows, R) blocks
        # wexp[j, j*D:(j+1)*D] = w ; lane l of a packed row belongs to logical
        # row (l // D) with embedding index (l % D).
        w_arg = jnp.kron(jnp.eye(r, dtype=jnp.float32), w32)   # (R, W)
        b_arg = jnp.tile(b32, (1, r))                           # (1, W)
        kernel = _packed_dot_kernel

    # ~2 MiB output tiles; cap so the grid has >= ~4 steps (v7x two-TC sharding
    # + pipelining).  Raising target_block_bytes much beyond ~3.5 MiB would
    # need vmem_limit_bytes on v5e (16 MiB scoped default).
    block_rows = max(16, (target_block_bytes // (w_lanes * out_itemsize)) // 16 * 16)
    block_rows = min(block_rows, max(16, _round_up(pl.cdiv(n_rows, 4), 16)))
    grid = (pl.cdiv(n_rows, block_rows),)            # partial last block is masked

    x_cols = x_in.shape[1]
    cost = pl.CostEstimate(
        flops=2 * n * dim_emb,
        transcendentals=0,
        bytes_accessed=(n * x.dtype.itemsize + n * dim_emb * out_itemsize
                        + int(w_arg.size) * 4 + int(b_arg.size) * 4),
    )

    # TODO(synk): for very small n (< ~1K packed rows) a fused plain-XLA op
    # beats kernel launch + per-step overhead; bypass is left to the caller.
    out = pl.pallas_call(
        kernel,
        out_shape=jax.ShapeDtypeStruct((n_rows, w_lanes), out_dtype),
        grid_spec=pltpu.PrefetchScalarGridSpec(
            num_scalar_prefetch=0,
            grid=grid,
            in_specs=[
                pl.BlockSpec((block_rows, x_cols), lambda i: (i, 0)),   # x tile
                pl.BlockSpec(w_arg.shape, lambda i: (0, 0)),            # weights (resident)
                pl.BlockSpec(b_arg.shape, lambda i: (0, 0)),            # bias (resident)
            ],
            out_specs=pl.BlockSpec((block_rows, w_lanes), lambda i: (i, 0)),
        ),
        compiler_params=pltpu.CompilerParams(
            dimension_semantics=("parallel",)),
        cost_estimate=cost,
    )(x_in, w_arg, b_arg)

    if r > 1:
        out = out.reshape(n_rows * r, dim_emb)       # metadata-only reshape
        if n_rows * r != n:
            out = out[:n]                            # only when n % r != 0
    return out.reshape(*lead_shape, dim_emb)


def reference(x, weight, bias):
    xf = x.astype(jnp.float32)
    y = xf @ weight.astype(jnp.float32).T + bias.astype(jnp.float32)
    return jnp.maximum(y, 0.0)


if __name__ == "__main__":
    batch, seq = 2, 8
    key = jax.random.PRNGKey(0)
    kx, kw, kb = jax.random.split(key, 3)
    x = jax.random.normal(kx, (batch, seq, 1), jnp.float32)

    def check(dim, xin, tag):
        # PyTorch default init for Linear(1, D): U(-1/sqrt(1), 1/sqrt(1)) = U(-1, 1).
        w = jax.random.uniform(kw, (dim, 1), jnp.float32, -1.0, 1.0)
        b = jax.random.uniform(kb, (dim,), jnp.float32, -1.0, 1.0)
        out = jax.block_until_ready(float_encoding(xin, w, b))
        ref = reference(xin, w, b)
        assert out.shape == (*xin.shape[:-1], dim), (tag, out.shape)
        assert jnp.allclose(out, ref, atol=1e-5, rtol=1e-5), f"mismatch ({tag})"

    # 1) Main case: D=32, f32 input, packed MXU path (R=8, W=256).
    check(32, x, "D=32 f32 packed")
    # 2) bf16 input exercises the in-kernel cast (module does input.float()).
    check(32, x.astype(jnp.bfloat16), "D=32 bf16 input")
    # 3) 128 % D != 0: lane-dense lcm packing (R=8, W=384), no masked fallback.
    check(48, x, "D=48 lcm packing")
    # 4) tiny embedding stays lane-dense via the MXU dot (R=32, W=128).
    check(4, x, "D=4 tiny embed")
    # 5) D multiple of 128 takes the pure-VPU broadcast path.
    check(128, x, "D=128 broadcast path")

    print("KERNEL_OK")
</pallas_src>

<mosaic_0001>
module attributes {stable_mosaic.version = 11 : i64} {
  func.func @_packed_dot_kernel(%arg0: i32, %arg1: memref<16x8xf32, #tpu.memory_space<vmem>>, %arg2: memref<8x256xf32, #tpu.memory_space<vmem>>, %arg3: memref<1x256xf32, #tpu.memory_space<vmem>>, %arg4: memref<16x256xf32, #tpu.memory_space<vmem>>) attributes {dimension_semantics = [#tpu.dimension_semantics<parallel>], iteration_bounds = array<i64: 1>, scalar_prefetch = 0 : i64, scratch_operands = 0 : i64, tpu.core_type = #tpu.core_type<tc>, window_params = [{transform_indices = @transform_0, window_bounds = array<i64: 16, 8>}, {pipeline_mode = #tpu.pipeline_mode<synchronous>, transform_indices = @transform_1, window_bounds = array<i64: 8, 256>}, {pipeline_mode = #tpu.pipeline_mode<synchronous>, transform_indices = @transform_2, window_bounds = array<i64: 1, 256>}, {transform_indices = @transform_3, window_bounds = array<i64: 16, 256>}]} {
    %c0 = arith.constant 0 : index
    %c0_0 = arith.constant 0 : index
    %0 = vector.load %arg1[%c0, %c0_0] : memref<16x8xf32, #tpu.memory_space<vmem>>, vector<16x8xf32>
    %c0_1 = arith.constant 0 : index
    %c0_2 = arith.constant 0 : index
    %1 = vector.load %arg2[%c0_1, %c0_2] : memref<8x256xf32, #tpu.memory_space<vmem>>, vector<8x256xf32>
    %cst = arith.constant dense<0.000000e+00> : vector<16x256xf32>
    %2 = tpu.matmul %0, %1, %cst {dimension_numbers = #tpu.dot_dimension_numbers<[1], [0], [0], [1], [0, 0, 1, 1], [], []>} : vector<16x8xf32>, vector<8x256xf32>, vector<16x256xf32> -> vector<16x256xf32>
    %c0_3 = arith.constant 0 : index
    %c0_4 = arith.constant 0 : index
    %3 = vector.load %arg3[%c0_3, %c0_4] : memref<1x256xf32, #tpu.memory_space<vmem>>, vector<1x256xf32>
    %4 = vector.broadcast %3 : vector<1x256xf32> to vector<16x256xf32>
    %5 = arith.addf %2, %4 : vector<16x256xf32>
    %cst_5 = arith.constant 0.000000e+00 : f32
    %6 = vector.broadcast %cst_5 : f32 to vector<16x256xf32>
    %7 = arith.maximumf %5, %6 : vector<16x256xf32>
    %c0_6 = arith.constant 0 : index
    %c0_7 = arith.constant 0 : index
    %8 = vector.load %arg4[%c0_6, %c0_7] : memref<16x256xf32, #tpu.memory_space<vmem>>, vector<16x256xf32>
    tpu.vector_store %arg4[%c0_6, %c0_7], %7 {strides = array<i32>} : memref<16x256xf32, #tpu.memory_space<vmem>>, vector<16x256xf32>,
    return
  }
  func.func @transform_0(%arg0: i32) -> (i32, i32) {
    %c0_i32 = arith.constant 0 : i32
    %c0_i32_0 = arith.constant 0 : i32
    return %arg0, %c0_i32 : i32, i32
  }
  func.func @transform_1(%arg0: i32) -> (i32, i32) {
    %c0_i32 = arith.constant 0 : i32
    %c0_i32_0 = arith.constant 0 : i32
    %c0_i32_1 = arith.constant 0 : i32
    return %c0_i32, %c0_i32_0 : i32, i32
  }
  func.func @transform_2(%arg0: i32) -> (i32, i32) {
    %c0_i32 = arith.constant 0 : i32
    %c0_i32_0 = arith.constant 0 : i32
    %c0_i32_1 = arith.constant 0 : i32
    return %c0_i32, %c0_i32_0 : i32, i32
  }
  func.func @transform_3(%arg0: i32) -> (i32, i32) {
    %c0_i32 = arith.constant 0 : i32
    %c0_i32_0 = arith.constant 0 : i32
    return %arg0, %c0_i32 : i32, i32
  }
}

</mosaic_0001>

<llo_original>
// kernel: tpu_custom_call.1
$region0: #{tpu_custom_call.1}
  #allocation0 [shape = 'u32[]', space=smem, size = 0x4, offset = 0x4, fixed_abs, tag = 'smem constant byte address 0x4 - core index']
  #allocation1 [shape = 'u32[144,128]{1,0:T(1,128)}', space=vmem, size = 0x12000, scoped, tag = 'internal scratch']
  %s0 = inlined_call_operand.hbm [shape: f32[2,8], index: 0, kind: input, shape index: {}]
  %s1 = inlined_call_operand.hbm [shape: f32[8,256], index: 1, kind: input, shape index: {}]
  %s2 = inlined_call_operand.vmem [shape: f32[1,256], index: 2, kind: input, shape index: {}]
  %s3 = inlined_call_operand.hbm [shape: f32[2,256], index: 3, kind: output, shape index: {}]
  %s4 = sld [smem:[#allocation0]]
  $region30: #{tpu_custom_call.1} parent=0
    _
  %s6 = ssub.s32 1, %s4
  %s7 = scalar_select 0, %s6, %s4
  $region1: #{tpu_custom_call.1} parent=0
    #allocation2 [shape = 'u8[8192]{0}', space=vmem, size = 0x2000, scoped, tag = 'input window, operand 0, single buffered']
    #allocation3 [shape = 's32[1]{0}', space=sflag, size = 0x4, scoped, tag = 'scoped memory for tpu_custom_call.1']
    #allocation4 [shape = 's32[1]{0}', space=sflag, size = 0x4, scoped, tag = 'scoped memory for tpu_custom_call.1']
    #allocation5 [shape = 'u8[8192]{0}', space=vmem, size = 0x2000, scoped, tag = 'input window, operand 1, single buffered']
    #allocation6 [shape = 's32[1]{0}', space=sflag, size = 0x4, scoped, tag = 'scoped memory for tpu_custom_call.1']
    #allocation7 [shape = 'u8[16384]{0}', space=vmem, size = 0x4000, scoped, tag = 'output window, operand 0, single buffered']
    %8 = vsyncpa [#allocation3], 0
    %9 = vsyncpa [#allocation6], 0
    %10 = vsyncpa [#allocation4], 0
    // Predicated region
    $region2: #{tpu_custom_call.1} parent=1 // pred_check
      _
    $region3: #{tpu_custom_call.1} parent=1 // pred_check_branch
      %12 = sbr.rel (0) target = $region5
    $region4: #{tpu_custom_call.1} parent=1 // pred_region
      %s14 = ssub.s32 256, 32
      %15 = vsyncadd [#allocation3], %s14
      %s16 = sshll.u32 [#allocation2], 4
      %s17 = int_to_ptr.vmem [resolvable:$true] %s16
      %22 = dma.hbm_to_vmem [thread:$0]  %s0, 32, %s17, [#allocation3], 32, 32, 2
    $region5: #{tpu_custom_call.1} parent=1 // pred_fallthru
      _
    // Predicated region
    $region6: #{tpu_custom_call.1} parent=1 // pred_check
      _
    $region7: #{tpu_custom_call.1} parent=1 // pred_check_branch
      %24 = sbr.rel (0) target = $region9
    $region8: #{tpu_custom_call.1} parent=1 // pred_region
      %s26 = ssub.s32 256, 256
      %27 = vsyncadd [#allocation6], %s26
      %s29 = sshll.u32 [#allocation5], 4
      %s30 = int_to_ptr.vmem [resolvable:$true] %s29
      %32 = dma.hbm_to_vmem [thread:$0]  %s1, 256, %s30, [#allocation6]
    $region9: #{tpu_custom_call.1} parent=1 // pred_fallthru
      _
    // Predicated region
    $region10: #{tpu_custom_call.1} parent=1 // pred_check
      _
    $region11: #{tpu_custom_call.1} parent=1 // pred_check_branch
      %34 = sbr.rel (0) target = $region13
    $region12: #{tpu_custom_call.1} parent=1 // pred_region
      _
    $region13: #{tpu_custom_call.1} parent=1 // pred_fallthru
      _
    // Predicated region
    $region14: #{tpu_custom_call.1} parent=1 // pred_check
      _
    $region15: #{tpu_custom_call.1} parent=1 // pred_check_branch
      %36 = sbr.rel (0) target = $region17
    $region16: #{tpu_custom_call.1} parent=1 // pred_region
      %37 = dma.done [#allocation3], 256
    $region17: #{tpu_custom_call.1} parent=1 // pred_fallthru
      _
    // Predicated region
    $region18: #{tpu_custom_call.1} parent=1 // pred_check
      _
    $region19: #{tpu_custom_call.1} parent=1 // pred_check_branch
      %39 = sbr.rel (0) target = $region21
    $region20: #{tpu_custom_call.1} parent=1 // pred_region
      %40 = dma.done [#allocation6], 256
    $region21: #{tpu_custom_call.1} parent=1 // pred_fallthru
      _
    %v41 = vld [vmem:[#allocation2] sm:$0xff]
    %v42 = vld [vmem:[#allocation2 + $0x8] sm:$0xff]
    %v43 = vld [vmem:[#allocation5] sm:$0xff]
    %v44 = vld [vmem:[#allocation5 + $0x8] sm:$0xff]
    %v45 = vld [vmem:[%s2] sm:$0x3]
    %v47 = vlaneseq
    %v48 = vshrl.u32 %v47, 7
    %v49 = vsub.s32 0, %v48
    %v50 = vrot.slane %v45, %v49
    %v51 = vlaneseq
    %v52 = vshrl.u32 %v51, 7
    %v53 = vsub.s32 1, %v52
    %v54 = vrot.slane %v45, %v53
    %vm57 = vcmask 64512
    %v59 = vsel %vm57, %v41, 0
    %v62 = vsel %vm57, %v42, 0
    %64 = vmatprep.subr.mxu0 %v44
    %65 = vmatpush1.msra.mxu0 %v43
    %66 = vmatprep.subr.mxu0 0.0
    %67 = vmatpush1.msra.mxu0 0.0
    %68 = vmatprep.subr.mxu0 0.0
    %69 = vmatpush1.msra.mxu0 0.0
    %70 = vmatprep.subr.mxu0 0.0
    %71 = vmatpush1.msra.mxu0 0.0
    %72 = vmatprep.subr.mxu0 0.0
    %73 = vmatpush1.msra.mxu0 0.0
    %74 = vmatprep.subr.mxu0 0.0
    %75 = vmatpush1.msra.mxu0 0.0
    %76 = vmatprep.subr.mxu0 0.0
    %77 = vmatpush1.msra.mxu0 0.0
    %78 = vmatprep.subr.mxu0 0.0
    %79 = vmatpush1.msra.mxu0 0.0
    %80 = vmatprep.subr.mxu0 0.0
    %81 = vmatpush1.msra.mxu0 0.0
    %82 = vmatprep.subr.mxu0 0.0
    %83 = vmatpush1.msra.mxu0 0.0
    %84 = vmatprep.subr.mxu0 0.0
    %85 = vmatpush1.msra.mxu0 0.0
    %86 = vmatprep.subr.mxu0 0.0
    %87 = vmatpush1.msra.mxu0 0.0
    %88 = vmatprep.subr.mxu0 0.0
    %89 = vmatpush1.msra.mxu0 0.0
    %90 = vmatprep.subr.mxu0 0.0
    %91 = vmatpush1.msra.mxu0 0.0
    %92 = vmatprep.subr.mxu0 0.0
    %93 = vmatpush1.msra.mxu0 0.0
    %94 = vmatprep.subr.mxu0 0.0
    %95 = vmatpush1.msra.mxu0 0.0
    %96 = vmatprep.subr.mxu0 0.0
    %97 = vmatpush1.msra.mxu0 0.0
    %98 = vmatprep.subr.mxu0 0.0
    %99 = vmatpush1.msra.mxu0 0.0
    %100 = vmatprep.subr.mxu0 0.0
    %101 = vmatpush1.msra.mxu0 0.0
    %102 = vmatprep.subr.mxu0 0.0
    %103 = vmatpush1.msra.mxu0 0.0
    %104 = vmatprep.subr.mxu0 0.0
    %105 = vmatpush1.msra.mxu0 0.0
    %106 = vmatprep.subr.mxu0 0.0
    %107 = vmatpush1.msra.mxu0 0.0
    %108 = vmatprep.subr.mxu0 0.0
    %109 = vmatpush1.msra.mxu0 0.0
    %110 = vmatprep.subr.mxu0 0.0
    %111 = vmatpush1.msra.mxu0 0.0
    %112 = vmatprep.subr.mxu0 0.0
    %113 = vmatpush1.msra.mxu0 0.0
    %114 = vmatprep.subr.mxu0 0.0
    %115 = vmatpush1.msra.mxu0 0.0
    %116 = vmatprep.subr.mxu0 0.0
    %117 = vmatpush1.msra.mxu0 0.0
    %118 = vmatprep.subr.mxu0 0.0
    %119 = vmatpush1.msra.mxu0 0.0
    %120 = vmatprep.subr.mxu0 0.0
    %121 = vmatpush1.msra.mxu0 0.0
    %122 = vmatprep.subr.mxu0 0.0
    %123 = vmatpush1.msra.mxu0 0.0
    %124 = vmatprep.subr.mxu0 0.0
    %125 = vmatpush1.msra.mxu0 0.0
    %126 = vmatprep.subr.mxu0 0.0
    %127 = vmatpush1.msra.mxu0 0.0
    %128 = vmatprep.mubr.f32.mxu0 0.0
    %129 = vmatmul.mubr.f32.gmra.mrb[0].mxu0 %v59
    %v130 = vpop.f32.mrb[0].mxu0
    %v131 = vadd.f32 %v50, %v130
    %v132 = vpop.f32.mrb[0].mxu0
    %v133 = vadd.f32 %v54, %v132
    %134 = vmatprep.mubr.f32.mxu0 0.0
    %135 = vmatmul.mubr.f32.gmra.mrb[0].mxu0 %v62
    %v136 = vpop.f32.mrb[0].mxu0
    %v137 = vadd.f32 %v50, %v136
    %v138 = vpop.f32.mrb[0].mxu0
    %v139 = vadd.f32 %v54, %v138
    %140 = vdwg.mxu0
    %v141 = vmax.f32 %v131, 0.0
    %v142 = vmax.f32 %v133, 0.0
    %v143 = vmax.f32 %v137, 0.0
    %v144 = vmax.f32 %v139, 0.0
    %v149 = vcombine.low %v141, %v142
    %v150 = vcombine.high %v141, %v142
    %v152 = vunpack.c.l.s4 1983009808
    %v153 = vunpack.c.0.s8 %v152
    %v154 = vlaneseq
    %v155 = vshrl.u32 %v154, 7
    %v156 = vsub.s32 %v153, %v155
    %v157 = vrot.slane %v149, %v156
    %v159 = vunpack.c.l.s4 1983009808
    %v160 = vunpack.c.0.s8 %v159
    %v161 = vlaneseq
    %v162 = vshrl.u32 %v161, 7
    %v163 = vsub.s32 %v160, %v162
    %v164 = vrot.slane %v150, %v163
    %v165 = vcombine.high %v157, %v157
    %v166 = vcombine.high %v164, %v164
    %v167 = vcombine.low %v143, %v144
    %v168 = vcombine.high %v143, %v144
    %v170 = vunpack.c.l.s4 1983009808
    %v171 = vunpack.c.0.s8 %v170
    %v172 = vlaneseq
    %v173 = vshrl.u32 %v172, 7
    %v174 = vsub.s32 %v171, %v173
    %v175 = vrot.slane %v167, %v174
    %v177 = vunpack.c.l.s4 1983009808
    %v178 = vunpack.c.0.s8 %v177
    %v179 = vlaneseq
    %v180 = vshrl.u32 %v179, 7
    %v181 = vsub.s32 %v178, %v180
    %v182 = vrot.slane %v168, %v181
    %v183 = vcombine.high %v175, %v175
    %v184 = vcombine.high %v182, %v182
    %193 = vst [vmem:[#allocation7] sm:$0xf] %v157
    %194 = vst [vmem:[#allocation7 + $0x4] sm:$0xf] %v165
    %195 = vst [vmem:[#allocation7 + $0x8] sm:$0xf] %v164
    %196 = vst [vmem:[#allocation7 + $0xc] sm:$0xf] %v166
    %197 = vst [vmem:[#allocation7 + $0x10] sm:$0xf] %v175
    %198 = vst [vmem:[#allocation7 + $0x14] sm:$0xf] %v183
    %199 = vst [vmem:[#allocation7 + $0x18] sm:$0xf] %v182
    %200 = vst [vmem:[#allocation7 + $0x1c] sm:$0xf] %v184
    // Predicated region
    $region22: #{tpu_custom_call.1} parent=1 // pred_check
      _
    $region23: #{tpu_custom_call.1} parent=1 // pred_check_branch
      %202 = sbr.rel (0) target = $region25
    $region24: #{tpu_custom_call.1} parent=1 // pred_region
      %s204 = ssub.s32 512, 64
      %205 = vsyncadd [#allocation4], %s204
      %s206 = sshll.u32 [#allocation7], 4
      %s207 = int_to_ptr.vmem [resolvable:$true] %s206
      %212 = dma.vmem_to_hbm [thread:$0]  %s207, 64, %s3, [#allocation4], 64, 64, 4
    $region25: #{tpu_custom_call.1} parent=1 // pred_fallthru
      _
    // Predicated region
    $region26: #{tpu_custom_call.1} parent=1 // pred_check
      _
    $region27: #{tpu_custom_call.1} parent=1 // pred_check_branch
      %214 = sbr.rel (0) target = $region29
    $region28: #{tpu_custom_call.1} parent=1 // pred_region
      %215 = dma.done [#allocation4], 512
    $region29: #{tpu_custom_call.1} parent=1 // pred_fallthru
      _
    %216 = vsyncpa [#allocation3], 1
    %217 = vsyncpa [#allocation6], 1
    %218 = vsyncpa [#allocation4], 1

</llo_original>
